<compile_context>
chip_gen: v5e
topology: v5e:2x2
jax: 0.10.0
libtpu: 0.0.40
codegen_flags: <defaults>
</compile_context>

<pallas_src>
import functools

import jax
import jax.numpy as jnp
from jax.experimental import pallas as pl
from jax.experimental.pallas import tpu as pltpu


_TARGET_TILE_BYTES = 2 << 20   # ~2 MiB per array per tile
_MIN_VMEM_LIMIT = 32 << 20     # safe scoped-VMEM request on v5e/v6e/v7x


def _round_up(x, m):
    return ((x + m - 1) // m) * m


def _lame_kernel(vp_ref, vs_ref, rho_ref, lam_ref, mu_ref):
    """Elementwise Lame-parameter computation on one tile."""
    vp = vp_ref[...]
    vs = vs_ref[...]
    rho = rho_ref[...]
    vs2 = vs * vs
    lam_ref[...] = (vp * vp - 2.0 * vs2) * rho
    mu_ref[...] = vs2 * rho


def lame_from_velocity(vp, vs, rho):
    """Pallas call: Lambda = (Vp^2 - 2 Vs^2) Rho, Mu = Vs^2 Rho (all f32)."""
    vp = vp.astype(jnp.float32)
    vs = vs.astype(jnp.float32)
    rho = rho.astype(jnp.float32)

    nz, nx, ny = vp.shape
    itemsize = 4
    plane_bytes = nx * ny * itemsize

    if plane_bytes <= _TARGET_TILE_BYTES:
        # Block over nz only; the block keeps the full (nx, ny) plane so the
        # trailing BlockSpec dims equal the array dims (always legal) and the
        # wrapper needs no reshape/pad copies at all.
        max_bz = max(1, _TARGET_TILE_BYTES // plane_bytes)
        min_grid = 2 if nz >= 2 else 1       # keep both v7x TCs busy
        gz = max(pl.cdiv(nz, max_bz), min_grid)
        bz = pl.cdiv(nz, gz)                 # balanced blocks, no empty tail
        gz = pl.cdiv(nz, bz)
        block = (bz, nx, ny)
        grid = (gz,)
        index_map = lambda i: (i, 0, 0)
    else:
        # A single z-plane already exceeds the target tile: additionally
        # block over nx in 8-aligned slabs (second-to-last block dim must be
        # a multiple of 8 or equal nx).
        row_bytes = ny * itemsize
        max_bx = max(8, ((_TARGET_TILE_BYTES // row_bytes) // 8) * 8)
        if nx <= 8 or max_bx >= nx:
            bx = nx
        else:
            gx = max(pl.cdiv(nx, max_bx), 2)
            bx = min(nx, _round_up(pl.cdiv(nx, gx), 8))
        gx = pl.cdiv(nx, bx)
        block = (1, bx, ny)
        grid = (nz, gx)
        index_map = lambda i, j: (i, j, 0)

    tile_bytes = block[0] * block[1] * block[2] * itemsize
    live_bytes = 5 * 2 * tile_bytes          # 5 arrays x double buffering
    vmem_limit = max(_MIN_VMEM_LIMIT,
                     _round_up(int(live_bytes * 1.25), 1 << 20))

    total = nz * nx * ny
    spec = pl.BlockSpec(block, index_map)
    out_struct = jax.ShapeDtypeStruct((nz, nx, ny), jnp.float32)

    lam, mu = pl.pallas_call(
        _lame_kernel,
        out_shape=(out_struct, out_struct),
        grid=grid,
        in_specs=[spec, spec, spec],
        out_specs=(spec, spec),
        compiler_params=pltpu.CompilerParams(
            dimension_semantics=("parallel",) * len(grid),
            vmem_limit_bytes=vmem_limit,
        ),
        cost_estimate=pl.CostEstimate(
            flops=6 * total,
            transcendentals=0,
            bytes_accessed=5 * total * itemsize,
        ),
    )(vp, vs, rho)
    return lam, mu


def padding_3d(vp, vs, rho, nz, nx, ny, nPml):
    """Edge-replicate padding by nPml on every face (ft.padding_3d analogue)."""
    del nz, nx, ny  # shapes carried by the arrays themselves
    pad = ((nPml, nPml), (nPml, nPml), (nPml, nPml))
    return (
        jnp.pad(vp, pad, mode="edge"),
        jnp.pad(vs, pad, mode="edge"),
        jnp.pad(rho, pad, mode="edge"),
    )


@functools.partial(jax.jit, static_argnames=("nPml",))
def _build_padded_moduli(vp, vs, rho, nPml):
    # Edge-replicate padding commutes with the elementwise Lame map, so run
    # the Pallas kernel on the unpadded volumes (less HBM traffic) and
    # replicate the edges of the results afterwards.  Numerically identical
    # to padding Vp/Vs/Rho first.
    lam, mu = lame_from_velocity(vp, vs, rho)
    pad = ((nPml, nPml), (nPml, nPml), (nPml, nPml))
    return (
        jnp.pad(lam, pad, mode="edge"),
        jnp.pad(mu, pad, mode="edge"),
        jnp.pad(rho.astype(jnp.float32), pad, mode="edge"),
    )


class FWIObscalc:
    """JAX/Pallas port of FWI_obscalc."""

    def __init__(self, Vp, Vs, Rho, Stf, opt):
        nPml = opt["nPml"]
        self.Lambda, self.Mu, self.Rho = _build_padded_moduli(
            Vp.astype(jnp.float32),
            Vs.astype(jnp.float32),
            Rho.astype(jnp.float32),
            nPml=int(nPml),
        )
        self.Stf = Stf
        self.para_fname = opt["para_fname"]

    def __call__(self, Shot_ids, ngpu=1):
        # TODO(synk): fwi_ops.obscalc is a full CUDA 3-D elastic
        # wave-propagation solver (time-stepped stress/velocity updates with
        # CPML + file I/O of the observed data); it is not translatable to a
        # single Pallas kernel here, so forward returns the Pallas-computed
        # elastic moduli and the per-shot source wavelets instead of running
        # the propagation.
        stf_sel = jnp.take(self.Stf, Shot_ids, axis=0)
        return self.Lambda, self.Mu, self.Rho, stf_sel


if __name__ == "__main__":
    key = jax.random.PRNGKey(0)
    k_vp, k_vs, k_rho, k_stf = jax.random.split(key, 4)

    # Small model consistent with the module: interior grid 16^3, nPml=4.
    nz = nx = ny = 16
    nPml = 4
    n_shots, n_steps = 4, 8

    Vp = 3000.0 + 200.0 * jax.random.normal(k_vp, (nz, nx, ny), jnp.float32)
    Vs = 1700.0 + 100.0 * jax.random.normal(k_vs, (nz, nx, ny), jnp.float32)
    Rho = 2200.0 + 50.0 * jax.random.normal(k_rho, (nz, nx, ny), jnp.float32)
    Stf = jax.random.normal(k_stf, (n_shots, n_steps), jnp.float32)

    opt = {"nz": nz, "nx": nx, "ny": ny, "nPml": nPml,
           "para_fname": "para.json"}

    model = FWIObscalc(Vp, Vs, Rho, Stf, opt)

    Shot_ids = jnp.array([0, 1], dtype=jnp.int32)
    Lam, Mu, Rho_pad, stf_sel = model(Shot_ids)
    jax.block_until_ready((Lam, Mu, Rho_pad, stf_sel))

    # Correctness check against a plain-JAX reference on the padded volumes.
    vp_p, vs_p, rho_p = padding_3d(Vp, Vs, Rho, nz, nx, ny, nPml)
    lam_ref = (vp_p ** 2 - 2.0 * vs_p ** 2) * rho_p
    mu_ref = vs_p ** 2 * rho_p

    pad_shape = (nz + 2 * nPml, nx + 2 * nPml, ny + 2 * nPml)
    assert Lam.shape == pad_shape
    assert Mu.shape == pad_shape
    assert Rho_pad.shape == pad_shape
    assert stf_sel.shape == (2, n_steps)

    # Scale-aware tolerance: values reach ~1e10 and (Vp^2 - 2 Vs^2) can cancel
    # to near zero, so compare max abs error against the overall reference
    # magnitude rather than a fixed atol.
    def max_rel_err(a, b):
        return float(jnp.max(jnp.abs(a - b)) / jnp.max(jnp.abs(b)))

    assert max_rel_err(Lam, lam_ref) < 1e-4, max_rel_err(Lam, lam_ref)
    assert max_rel_err(Mu, mu_ref) < 1e-4, max_rel_err(Mu, mu_ref)
    assert max_rel_err(Rho_pad, rho_p) < 1e-7, max_rel_err(Rho_pad, rho_p)

    print("KERNEL_OK")
</pallas_src>

<mosaic_0001>
module attributes {stable_mosaic.version = 11 : i64} {
  func.func @_lame_kernel(%arg0: i32, %arg1: memref<8x16x16xf32, #tpu.memory_space<vmem>>, %arg2: memref<8x16x16xf32, #tpu.memory_space<vmem>>, %arg3: memref<8x16x16xf32, #tpu.memory_space<vmem>>, %arg4: memref<8x16x16xf32, #tpu.memory_space<vmem>>, %arg5: memref<8x16x16xf32, #tpu.memory_space<vmem>>) attributes {dimension_semantics = [#tpu.dimension_semantics<parallel>], iteration_bounds = array<i64: 2>, scalar_prefetch = 0 : i64, scratch_operands = 0 : i64, tpu.core_type = #tpu.core_type<tc>, window_params = [{transform_indices = @transform_0, window_bounds = array<i64: 8, 16, 16>}, {transform_indices = @transform_1, window_bounds = array<i64: 8, 16, 16>}, {transform_indices = @transform_2, window_bounds = array<i64: 8, 16, 16>}, {transform_indices = @transform_3, window_bounds = array<i64: 8, 16, 16>}, {transform_indices = @transform_4, window_bounds = array<i64: 8, 16, 16>}]} {
    %c0 = arith.constant 0 : index
    %c0_0 = arith.constant 0 : index
    %c0_1 = arith.constant 0 : index
    %0 = vector.load %arg1[%c0, %c0_0, %c0_1] : memref<8x16x16xf32, #tpu.memory_space<vmem>>, vector<8x16x16xf32>
    %c0_2 = arith.constant 0 : index
    %c0_3 = arith.constant 0 : index
    %c0_4 = arith.constant 0 : index
    %1 = vector.load %arg2[%c0_2, %c0_3, %c0_4] : memref<8x16x16xf32, #tpu.memory_space<vmem>>, vector<8x16x16xf32>
    %c0_5 = arith.constant 0 : index
    %c0_6 = arith.constant 0 : index
    %c0_7 = arith.constant 0 : index
    %2 = vector.load %arg3[%c0_5, %c0_6, %c0_7] : memref<8x16x16xf32, #tpu.memory_space<vmem>>, vector<8x16x16xf32>
    %3 = arith.mulf %1, %1 : vector<8x16x16xf32>
    %4 = arith.mulf %0, %0 : vector<8x16x16xf32>
    %cst = arith.constant 2.000000e+00 : f32
    %5 = vector.broadcast %cst : f32 to vector<8x16x16xf32>
    %6 = arith.mulf %5, %3 : vector<8x16x16xf32>
    %7 = arith.subf %4, %6 : vector<8x16x16xf32>
    %8 = arith.mulf %7, %2 : vector<8x16x16xf32>
    %c0_8 = arith.constant 0 : index
    %c0_9 = arith.constant 0 : index
    %c0_10 = arith.constant 0 : index
    %9 = vector.load %arg4[%c0_8, %c0_9, %c0_10] : memref<8x16x16xf32, #tpu.memory_space<vmem>>, vector<8x16x16xf32>
    tpu.vector_store %arg4[%c0_8, %c0_9, %c0_10], %8 {strides = array<i32>} : memref<8x16x16xf32, #tpu.memory_space<vmem>>, vector<8x16x16xf32>,
    %10 = arith.mulf %3, %2 : vector<8x16x16xf32>
    %c0_11 = arith.constant 0 : index
    %c0_12 = arith.constant 0 : index
    %c0_13 = arith.constant 0 : index
    %11 = vector.load %arg5[%c0_11, %c0_12, %c0_13] : memref<8x16x16xf32, #tpu.memory_space<vmem>>, vector<8x16x16xf32>
    tpu.vector_store %arg5[%c0_11, %c0_12, %c0_13], %10 {strides = array<i32>} : memref<8x16x16xf32, #tpu.memory_space<vmem>>, vector<8x16x16xf32>,
    return
  }
  func.func @transform_0(%arg0: i32) -> (i32, i32, i32) {
    %c0_i32 = arith.constant 0 : i32
    %c0_i32_0 = arith.constant 0 : i32
    %c0_i32_1 = arith.constant 0 : i32
    return %arg0, %c0_i32, %c0_i32_0 : i32, i32, i32
  }
  func.func @transform_1(%arg0: i32) -> (i32, i32, i32) {
    %c0_i32 = arith.constant 0 : i32
    %c0_i32_0 = arith.constant 0 : i32
    %c0_i32_1 = arith.constant 0 : i32
    return %arg0, %c0_i32, %c0_i32_0 : i32, i32, i32
  }
  func.func @transform_2(%arg0: i32) -> (i32, i32, i32) {
    %c0_i32 = arith.constant 0 : i32
    %c0_i32_0 = arith.constant 0 : i32
    %c0_i32_1 = arith.constant 0 : i32
    return %arg0, %c0_i32, %c0_i32_0 : i32, i32, i32
  }
  func.func @transform_3(%arg0: i32) -> (i32, i32, i32) {
    %c0_i32 = arith.constant 0 : i32
    %c0_i32_0 = arith.constant 0 : i32
    %c0_i32_1 = arith.constant 0 : i32
    return %arg0, %c0_i32, %c0_i32_0 : i32, i32, i32
  }
  func.func @transform_4(%arg0: i32) -> (i32, i32, i32) {
    %c0_i32 = arith.constant 0 : i32
    %c0_i32_0 = arith.constant 0 : i32
    %c0_i32_1 = arith.constant 0 : i32
    return %arg0, %c0_i32, %c0_i32_0 : i32, i32, i32
  }
}

</mosaic_0001>

<llo_original>
// kernel: _build_padded_moduli.1
$region0: #{_build_padded_moduli.1}
  #allocation0 [shape = 'u32[]', space=smem, size = 0x4, offset = 0x4, fixed_abs, tag = 'smem constant byte address 0x4 - core index']
  #allocation1 [shape = 'u32[72,128]{1,0:T(1,128)}', space=vmem, size = 0x9000, scoped, tag = 'internal scratch']
  %s0 = inlined_call_operand.hbm [shape: f32[16,16,16], index: 0, kind: input, shape index: {}]
  %s1 = inlined_call_operand.hbm [shape: f32[16,16,16], index: 1, kind: input, shape index: {}]
  %s2 = inlined_call_operand.hbm [shape: f32[16,16,16], index: 2, kind: input, shape index: {}]
  %s3 = inlined_call_operand.vmem [shape: f32[16,16,16], index: 3, kind: output, shape index: {0}]
  %s4 = inlined_call_operand.vmem [shape: f32[16,16,16], index: 4, kind: output, shape index: {1}]
  %5 = xla_tuple %s3, %s4
  %s6 = sld [smem:[#allocation0]]
  $region65: #{_build_padded_moduli.1} parent=0
    _
  %s8 = ssub.s32 1, %s6
  %s9 = scalar_select 0, %s8, %s6
  $region1: #{_build_padded_moduli.1} parent=0
    #allocation2 [shape = 'u8[131072]{0}', space=vmem, size = 0x20000, scoped, tag = 'input window, operand 0']
    #allocation3 [shape = 's32[2]{0}', space=sflag, size = 0x8, scoped, tag = 'scoped memory for _build_padded_moduli.1']
    #allocation4 [shape = 'u8[131072]{0}', space=vmem, size = 0x20000, scoped, tag = 'input window, operand 1']
    #allocation5 [shape = 's32[2]{0}', space=sflag, size = 0x8, scoped, tag = 'scoped memory for _build_padded_moduli.1']
    #allocation6 [shape = 'u8[131072]{0}', space=vmem, size = 0x20000, scoped, tag = 'input window, operand 2']
    %10 = vsyncpa [#allocation3], 0
    %s11 = scalar_lea.sflag [#allocation3], 1
    %12 = vsyncpa %s11, 0
    %13 = vsyncpa [#allocation5], 0
    %s14 = scalar_lea.sflag [#allocation5], 1
    %15 = vsyncpa %s14, 0
    loop: start=0, step=1, limit=4
    $region2: #{_build_padded_moduli.1} parent=1 // loop_pre_header
      _
    $region3: #{_build_padded_moduli.1} parent=1 // loop_header
      %s17 = sphi 0, %s21
      %p18 = scmp.ge.s32.totalorder %s17, 4
      %s27 = sphi 0, %s29
      %s30 = sphi 0, %s27
      %s31 = sphi 0, %s30
      %s47 = sphi 0, %s31
      %s53 = sphi 0, %s55
      %s56 = sphi 0, %s53
      %s57 = sphi 0, %s56
      %s73 = sphi 0, %s57
      %s79 = sphi 0, %s81
      %s82 = sphi 0, %s79
      %s83 = sphi 0, %s82
      %s99 = sphi 0, %s83
      %s105 = sphi 0, %s107
      %s108 = sphi 0, %s105
      %s109 = sphi 0, %s108
      %s125 = sphi 0, %s109
      %s131 = sphi 0, %s133
      %s134 = sphi 0, %s131
      %s135 = sphi 0, %s134
      %s151 = sphi 0, %s135
    $region4: #{_build_padded_moduli.1} parent=1 // loop_header_branch
      %20 = sbr.rel (%p18) target = $region8
    $region5: #{_build_padded_moduli.1} parent=1 // loop_body
      %s22 = ssub.s32 %s17, 1
      %s23 = ssub.s32 %s17, 2
      %s24 = sadd.s32 %s17, 1
      %s25 = ssub.s32 %s17, %s24
      %p26 = scmp.eq.s32.totalorder %s25, 0
      %s28 = sadd.s32 %s27, 1
      %s29 = scalar_select %p26, %s27, %s28
      %p32 = pneg %p26
      %p33 = scmp.eq.s32.totalorder %s17, 1
      %p34 = por %p32, %p33
      %p35 = scmp.ne.s32.totalorder %s27, %s30
      %p36 = scmp.eq.s32.totalorder %s17, 0
      %p37 = por %p35, %p36
      %p38 = scmp.ne.s32.totalorder %s27, %s30
      %p39 = scmp.eq.s32.totalorder %s22, 1
      %p40 = por %p38, %p39
      %p41 = scmp.ne.s32.totalorder %s30, %s31
      %p42 = scmp.eq.s32.totalorder %s22, 0
      %p43 = por %p41, %p42
      %p44 = scmp.ne.s32.totalorder %s30, %s31
      %p45 = scmp.eq.s32.totalorder %s23, 1
      %p46 = por %p44, %p45
      %p48 = scmp.ne.s32.totalorder %s31, %s47
      %p49 = scmp.eq.s32.totalorder %s23, 0
      %p50 = por %p48, %p49
      %s51 = ssub.s32 %s17, %s24
      %p52 = scmp.eq.s32.totalorder %s51, 0
      %s54 = sadd.s32 %s53, 1
      %s55 = scalar_select %p52, %s53, %s54
      %p58 = pneg %p52
      %p59 = scmp.eq.s32.totalorder %s17, 1
      %p60 = por %p58, %p59
      %p61 = scmp.ne.s32.totalorder %s53, %s56
      %p62 = scmp.eq.s32.totalorder %s17, 0
      %p63 = por %p61, %p62
      %p64 = scmp.ne.s32.totalorder %s53, %s56
      %p65 = scmp.eq.s32.totalorder %s22, 1
      %p66 = por %p64, %p65
      %p67 = scmp.ne.s32.totalorder %s56, %s57
      %p68 = scmp.eq.s32.totalorder %s22, 0
      %p69 = por %p67, %p68
      %p70 = scmp.ne.s32.totalorder %s56, %s57
      %p71 = scmp.eq.s32.totalorder %s23, 1
      %p72 = por %p70, %p71
      %p74 = scmp.ne.s32.totalorder %s57, %s73
      %p75 = scmp.eq.s32.totalorder %s23, 0
      %p76 = por %p74, %p75
      %s77 = ssub.s32 %s17, %s24
      %p78 = scmp.eq.s32.totalorder %s77, 0
      %s80 = sadd.s32 %s79, 1
      %s81 = scalar_select %p78, %s79, %s80
      %p84 = pneg %p78
      %p85 = scmp.eq.s32.totalorder %s17, 1
      %p86 = por %p84, %p85
      %p87 = scmp.ne.s32.totalorder %s79, %s82
      %p88 = scmp.eq.s32.totalorder %s17, 0
      %p89 = por %p87, %p88
      %p90 = scmp.ne.s32.totalorder %s79, %s82
      %p91 = scmp.eq.s32.totalorder %s22, 1
      %p92 = por %p90, %p91
      %p93 = scmp.ne.s32.totalorder %s82, %s83
      %p94 = scmp.eq.s32.totalorder %s22, 0
      %p95 = por %p93, %p94
      %p96 = scmp.ne.s32.totalorder %s82, %s83
      %p97 = scmp.eq.s32.totalorder %s23, 1
      %p98 = por %p96, %p97
      %p100 = scmp.ne.s32.totalorder %s83, %s99
      %p101 = scmp.eq.s32.totalorder %s23, 0
      %p102 = por %p100, %p101
      %s103 = ssub.s32 %s17, %s24
      %p104 = scmp.eq.s32.totalorder %s103, 0
      %s106 = sadd.s32 %s105, 1
      %s107 = scalar_select %p104, %s105, %s106
      %p110 = pneg %p104
      %p111 = scmp.eq.s32.totalorder %s17, 1
      %p112 = por %p110, %p111
      %p113 = scmp.ne.s32.totalorder %s105, %s108
      %p114 = scmp.eq.s32.totalorder %s17, 0
      %p115 = por %p113, %p114
      %p116 = scmp.ne.s32.totalorder %s105, %s108
      %p117 = scmp.eq.s32.totalorder %s22, 1
      %p118 = por %p116, %p117
      %p119 = scmp.ne.s32.totalorder %s108, %s109
      %p120 = scmp.eq.s32.totalorder %s22, 0
      %p121 = por %p119, %p120
      %p122 = scmp.ne.s32.totalorder %s108, %s109
      %p123 = scmp.eq.s32.totalorder %s23, 1
      %p124 = por %p122, %p123
      %p126 = scmp.ne.s32.totalorder %s109, %s125
      %p127 = scmp.eq.s32.totalorder %s23, 0
      %p128 = por %p126, %p127
      %s129 = ssub.s32 %s17, %s24
      %p130 = scmp.eq.s32.totalorder %s129, 0
      %s132 = sadd.s32 %s131, 1
      %s133 = scalar_select %p130, %s131, %s132
      %p136 = pneg %p130
      %p137 = scmp.eq.s32.totalorder %s17, 1
      %p138 = por %p136, %p137
      %p139 = scmp.ne.s32.totalorder %s131, %s134
      %p140 = scmp.eq.s32.totalorder %s17, 0
      %p141 = por %p139, %p140
      %p142 = scmp.ne.s32.totalorder %s131, %s134
      %p143 = scmp.eq.s32.totalorder %s22, 1
      %p144 = por %p142, %p143
      %p145 = scmp.ne.s32.totalorder %s134, %s135
      %p146 = scmp.eq.s32.totalorder %s22, 0
      %p147 = por %p145, %p146
      %p148 = scmp.ne.s32.totalorder %s134, %s135
      %p149 = scmp.eq.s32.totalorder %s23, 1
      %p150 = por %p148, %p149
      %p152 = scmp.ne.s32.totalorder %s135, %s151
      %p153 = scmp.eq.s32.totalorder %s23, 0
      %p154 = por %p152, %p153
      %p155 = scmp.le.s32.totalorder 1, %s17
      %p156 = scmp.lt.s32.totalorder %s17, 3
      %p157 = pnand %p155, %p156
      %p158 = pneg %p157
      // Predicated region
      $region9: #{_build_padded_moduli.1} parent=5 // pred_check
        _
      $region10: #{_build_padded_moduli.1} parent=5 // pred_check_branch
        %160 = sbr.rel (%p157) target = $region12
      $region11: #{_build_padded_moduli.1} parent=5 // pred_region
        %s161 = ssub.s32 %s17, 1
      $region12: #{_build_padded_moduli.1} parent=5 // pred_fallthru
        _
      %p162 = scmp.lt.s32.totalorder %s17, 2
      // Predicated region
      $region13: #{_build_padded_moduli.1} parent=5 // pred_check
        %p163 = pneg %p162
      $region14: #{_build_padded_moduli.1} parent=5 // pred_check_branch
        %165 = sbr.rel (%p163) target = $region16
      $region15: #{_build_padded_moduli.1} parent=5 // pred_region
        // Predicated region
        $region17: #{_build_padded_moduli.1} parent=15 // pred_check
          %p166 = pneg %p37
        $region18: #{_build_padded_moduli.1} parent=15 // pred_check_branch
          %168 = sbr.rel (%p166) target = $region20
        $region19: #{_build_padded_moduli.1} parent=15 // pred_region
          %s169 = sand.u32 %s27, 1
          %s170 = scalar_lea.sflag [#allocation3], %s169
          %s171 = sand.u32 %s27, 1
          %s172 = smul.addr %s171, 128
          %s173 = scalar_lea.vmem [#allocation2], %s172
          %s174 = smul.u32 8, %s17
          %176 = vsyncadd %s170, 0
          %s177 = smul.addr %s174, 2
          %s178 = smul.addr %s177, 8
          %s179 = scalar_lea.hbm %s0, %s178
          %s180 = sshll.u32 %s179, 4
          %s181 = int_to_ptr.hbm [resolvable:$true] %s180
          %s182 = sshll.u32 %s173, 4
          %s183 = int_to_ptr.vmem [resolvable:$true] %s182
          %188 = dma.hbm_to_vmem [thread:$0]  %s181, 2048, %s183, %s170, 128, 128, 8
        $region20: #{_build_padded_moduli.1} parent=15 // pred_fallthru
          _
        // Predicated region
        $region21: #{_build_padded_moduli.1} parent=15 // pred_check
          %p189 = pneg %p63
        $region22: #{_build_padded_moduli.1} parent=15 // pred_check_branch
          %191 = sbr.rel (%p189) target = $region24
        $region23: #{_build_padded_moduli.1} parent=15 // pred_region
          %s192 = sand.u32 %s17, 1
          %s193 = scalar_lea.sflag [#allocation5], %s192
          %s194 = sand.u32 %s53, 1
          %s195 = smul.addr %s194, 128
          %s196 = scalar_lea.vmem [#allocation4], %s195
          %s197 = smul.u32 8, %s17
          %199 = vsyncadd %s193, 0
          %s200 = smul.addr %s197, 2
          %s201 = smul.addr %s200, 8
          %s202 = scalar_lea.hbm %s1, %s201
          %s203 = sshll.u32 %s202, 4
          %s204 = int_to_ptr.hbm [resolvable:$true] %s203
          %s205 = sshll.u32 %s196, 4
          %s206 = int_to_ptr.vmem [resolvable:$true] %s205
          %211 = dma.hbm_to_vmem [thread:$0]  %s204, 2048, %s206, %s193, 128, 128, 8
        $region24: #{_build_padded_moduli.1} parent=15 // pred_fallthru
          _
        // Predicated region
        $region25: #{_build_padded_moduli.1} parent=15 // pred_check
          %p212 = pneg %p89
        $region26: #{_build_padded_moduli.1} parent=15 // pred_check_branch
          %214 = sbr.rel (%p212) target = $region28
        $region27: #{_build_padded_moduli.1} parent=15 // pred_region
          %s215 = sand.u32 %s17, 1
          %s216 = scalar_lea.sflag [#allocation5], %s215
          %s217 = sand.u32 %s79, 1
          %s218 = smul.addr %s217, 128
          %s219 = scalar_lea.vmem [#allocation6], %s218
          %s220 = smul.u32 8, %s17
          %222 = vsyncadd %s216, 0
          %s223 = smul.addr %s220, 2
          %s224 = smul.addr %s223, 8
          %s225 = scalar_lea.hbm %s2, %s224
          %s226 = sshll.u32 %s225, 4
          %s227 = int_to_ptr.hbm [resolvable:$true] %s226
          %s228 = sshll.u32 %s219, 4
          %s229 = int_to_ptr.vmem [resolvable:$true] %s228
          %234 = dma.hbm_to_vmem [thread:$0]  %s227, 2048, %s229, %s216, 128, 128, 8
        $region28: #{_build_padded_moduli.1} parent=15 // pred_fallthru
          _
      $region16: #{_build_padded_moduli.1} parent=5 // pred_fallthru
        _
      %p235 = scmp.le.s32.totalorder 1, %s17
      %p236 = scmp.lt.s32.totalorder %s17, 3
      %p237 = pnand %p235, %p236
      %p238 = pneg %p237
      // Predicated region
      $region29: #{_build_padded_moduli.1} parent=5 // pred_check
        _
      $region30: #{_build_padded_moduli.1} parent=5 // pred_check_branch
        %240 = sbr.rel (%p237) target = $region32
      $region31: #{_build_padded_moduli.1} parent=5 // pred_region
        %s241 = ssub.s32 %s17, 1
        %s242 = sand.u32 %s30, 1
        %s243 = scalar_lea.sflag [#allocation3], %s242
        %s244 = sand.u32 %s30, 1
        %s245 = smul.addr %s244, 128
        %s246 = scalar_lea.vmem [#allocation2], %s245
        // Predicated region
        $region33: #{_build_padded_moduli.1} parent=31 // pred_check
          %p247 = pneg %p43
        $region34: #{_build_padded_moduli.1} parent=31 // pred_check_branch
          %249 = sbr.rel (%p247) target = $region36
        $region35: #{_build_padded_moduli.1} parent=31 // pred_region
          %251 = dma.done %s243, 2048
        $region36: #{_build_padded_moduli.1} parent=31 // pred_fallthru
          _
        %s252 = sand.u32 %s22, 1
        %s253 = scalar_lea.sflag [#allocation5], %s252
        %s254 = sand.u32 %s56, 1
        %s255 = smul.addr %s254, 128
        %s256 = scalar_lea.vmem [#allocation4], %s255
        // Predicated region
        $region37: #{_build_padded_moduli.1} parent=31 // pred_check
          %p257 = pneg %p69
        $region38: #{_build_padded_moduli.1} parent=31 // pred_check_branch
          %259 = sbr.rel (%p257) target = $region40
        $region39: #{_build_padded_moduli.1} parent=31 // pred_region
          %261 = dma.done %s253, 2048
        $region40: #{_build_padded_moduli.1} parent=31 // pred_fallthru
          _
        %s262 = sand.u32 %s22, 1
        %s263 = scalar_lea.sflag [#allocation5], %s262
        %s264 = sand.u32 %s82, 1
        %s265 = smul.addr %s264, 128
        %s266 = scalar_lea.vmem [#allocation6], %s265
        // Predicated region
        $region41: #{_build_padded_moduli.1} parent=31 // pred_check
          %p267 = pneg %p95
        $region42: #{_build_padded_moduli.1} parent=31 // pred_check_branch
          %269 = sbr.rel (%p267) target = $region44
        $region43: #{_build_padded_moduli.1} parent=31 // pred_region
          %271 = dma.done %s263, 2048
        $region44: #{_build_padded_moduli.1} parent=31 // pred_fallthru
          _
        %s272 = sand.u32 %s30, 1
        %s273 = scalar_lea.sflag [#allocation3], %s272
        %s274 = sand.u32 %s30, 1
        %s275 = smul.addr %s274, 128
        %s276 = scalar_lea.vmem [#allocation2], %s275
        %p277 = pneg %p43
        %p278 = pneg %p40
        %s279 = sand.u32 %s22, 1
        %s280 = scalar_lea.sflag [#allocation5], %s279
        %s281 = sand.u32 %s56, 1
        %s282 = smul.addr %s281, 128
        %s283 = scalar_lea.vmem [#allocation4], %s282
        %p284 = pneg %p69
        %p285 = pneg %p66
        %s286 = sand.u32 %s22, 1
        %s287 = scalar_lea.sflag [#allocation5], %s286
        %s288 = sand.u32 %s82, 1
        %s289 = smul.addr %s288, 128
        %s290 = scalar_lea.vmem [#allocation6], %s289
        %p291 = pneg %p95
        %p292 = pneg %p92
        %p293 = pneg %p121
        %p294 = pneg %p118
        %s295 = smul.u32 8, %s22
        %p296 = scmp.lt.s32.totalorder %s295, 15
        %s297 = scalar_select %p296, %s295, 15
        %s298 = smul.addr %s297, 2
        %s299 = smul.addr %s298, 8
        %s300 = scalar_lea.vmem %s3, %s299
        %p301 = pneg %p147
        %p302 = pneg %p144
        %s303 = smul.u32 8, %s22
        %p304 = scmp.lt.s32.totalorder %s303, 15
        %s305 = scalar_select %p304, %s303, 15
        %s306 = smul.addr %s305, 2
        %s307 = smul.addr %s306, 8
        %s308 = scalar_lea.vmem %s4, %s307
        %s309 = smul.u32 8, %s22
        %s310 = smul.u32 8, %s22
        %s311 = smul.u32 8, %s22
        %s312 = smul.u32 8, %s22
        %p313 = scmp.lt.s32.totalorder %s312, 15
        %s314 = scalar_select %p313, %s312, 15
        %s315 = smul.addr %s314, 2
        %s316 = smul.addr %s315, 8
        %s317 = scalar_lea.vmem %s3, %s316
        %s318 = smul.u32 8, %s22
        %s319 = smul.u32 8, %s22
        %p320 = scmp.lt.s32.totalorder %s319, 15
        %s321 = scalar_select %p320, %s319, 15
        %s322 = smul.addr %s321, 2
        %s323 = smul.addr %s322, 8
        %s324 = scalar_lea.vmem %s4, %s323
        %s325 = smul.u32 8, %s22
        %v326 = vld [vmem:[%s246] sm:$0xff]
        %v327 = vld [vmem:[%s246 + $0x8] sm:$0xff]
        %v328 = vld [vmem:[%s246 + $0x10] sm:$0xff]
        %v329 = vld [vmem:[%s246 + $0x18] sm:$0xff]
        %v330 = vld [vmem:[%s246 + $0x20] sm:$0xff]
        %v331 = vld [vmem:[%s246 + $0x28] sm:$0xff]
        %v332 = vld [vmem:[%s246 + $0x30] sm:$0xff]
        %v333 = vld [vmem:[%s246 + $0x38] sm:$0xff]
        %v334 = vld [vmem:[%s246 + $0x40] sm:$0xff]
        %v335 = vld [vmem:[%s246 + $0x48] sm:$0xff]
        %v336 = vld [vmem:[%s246 + $0x50] sm:$0xff]
        %v337 = vld [vmem:[%s246 + $0x58] sm:$0xff]
        %v338 = vld [vmem:[%s246 + $0x60] sm:$0xff]
        %v339 = vld [vmem:[%s246 + $0x68] sm:$0xff]
        %v340 = vld [vmem:[%s246 + $0x70] sm:$0xff]
        %v341 = vld [vmem:[%s246 + $0x78] sm:$0xff]
        %v342 = vld [vmem:[%s256] sm:$0xff]
        %v343 = vld [vmem:[%s256 + $0x8] sm:$0xff]
        %v344 = vld [vmem:[%s256 + $0x10] sm:$0xff]
        %v345 = vld [vmem:[%s256 + $0x18] sm:$0xff]
        %v346 = vld [vmem:[%s256 + $0x20] sm:$0xff]
        %v347 = vld [vmem:[%s256 + $0x28] sm:$0xff]
        %v348 = vld [vmem:[%s256 + $0x30] sm:$0xff]
        %v349 = vld [vmem:[%s256 + $0x38] sm:$0xff]
        %v350 = vld [vmem:[%s256 + $0x40] sm:$0xff]
        %v351 = vld [vmem:[%s256 + $0x48] sm:$0xff]
        %v352 = vld [vmem:[%s256 + $0x50] sm:$0xff]
        %v353 = vld [vmem:[%s256 + $0x58] sm:$0xff]
        %v354 = vld [vmem:[%s256 + $0x60] sm:$0xff]
        %v355 = vld [vmem:[%s256 + $0x68] sm:$0xff]
        %v356 = vld [vmem:[%s256 + $0x70] sm:$0xff]
        %v357 = vld [vmem:[%s256 + $0x78] sm:$0xff]
        %v358 = vld [vmem:[%s266] sm:$0xff]
        %v359 = vld [vmem:[%s266 + $0x8] sm:$0xff]
        %v360 = vld [vmem:[%s266 + $0x10] sm:$0xff]
        %v361 = vld [vmem:[%s266 + $0x18] sm:$0xff]
        %v362 = vld [vmem:[%s266 + $0x20] sm:$0xff]
        %v363 = vld [vmem:[%s266 + $0x28] sm:$0xff]
        %v364 = vld [vmem:[%s266 + $0x30] sm:$0xff]
        %v365 = vld [vmem:[%s266 + $0x38] sm:$0xff]
        %v366 = vld [vmem:[%s266 + $0x40] sm:$0xff]
        %v367 = vld [vmem:[%s266 + $0x48] sm:$0xff]
        %v368 = vld [vmem:[%s266 + $0x50] sm:$0xff]
        %v369 = vld [vmem:[%s266 + $0x58] sm:$0xff]
        %v370 = vld [vmem:[%s266 + $0x60] sm:$0xff]
        %v371 = vld [vmem:[%s266 + $0x68] sm:$0xff]
        %v372 = vld [vmem:[%s266 + $0x70] sm:$0xff]
        %v373 = vld [vmem:[%s266 + $0x78] sm:$0xff]
        %v374 = vmul.f32 %v342, %v342
        %v375 = vmul.f32 %v343, %v343
        %v376 = vmul.f32 %v344, %v344
        %v377 = vmul.f32 %v345, %v345
        %v378 = vmul.f32 %v346, %v346
        %v379 = vmul.f32 %v347, %v347
        %v380 = vmul.f32 %v348, %v348
        %v381 = vmul.f32 %v349, %v349
        %v382 = vmul.f32 %v350, %v350
        %v383 = vmul.f32 %v351, %v351
        %v384 = vmul.f32 %v352, %v352
        %v385 = vmul.f32 %v353, %v353
        %v386 = vmul.f32 %v354, %v354
        %v387 = vmul.f32 %v355, %v355
        %v388 = vmul.f32 %v356, %v356
        %v389 = vmul.f32 %v357, %v357
        %v390 = vmul.f32 %v326, %v326
        %v391 = vmul.f32 %v327, %v327
        %v392 = vmul.f32 %v328, %v328
        %v393 = vmul.f32 %v329, %v329
        %v394 = vmul.f32 %v330, %v330
        %v395 = vmul.f32 %v331, %v331
        %v396 = vmul.f32 %v332, %v332
        %v397 = vmul.f32 %v333, %v333
        %v398 = vmul.f32 %v334, %v334
        %v399 = vmul.f32 %v335, %v335
        %v400 = vmul.f32 %v336, %v336
        %v401 = vmul.f32 %v337, %v337
        %v402 = vmul.f32 %v338, %v338
        %v403 = vmul.f32 %v339, %v339
        %v404 = vmul.f32 %v340, %v340
        %v405 = vmul.f32 %v341, %v341
        %v406 = vmul.f32 %v374, 2.0
        %v407 = vmul.f32 %v375, 2.0
        %v408 = vmul.f32 %v376, 2.0
        %v409 = vmul.f32 %v377, 2.0
        %v410 = vmul.f32 %v378, 2.0
        %v411 = vmul.f32 %v379, 2.0
        %v412 = vmul.f32 %v380, 2.0
        %v413 = vmul.f32 %v381, 2.0
        %v414 = vmul.f32 %v382, 2.0
        %v415 = vmul.f32 %v383, 2.0
        %v416 = vmul.f32 %v384, 2.0
        %v417 = vmul.f32 %v385, 2.0
        %v418 = vmul.f32 %v386, 2.0
        %v419 = vmul.f32 %v387, 2.0
        %v420 = vmul.f32 %v388, 2.0
        %v421 = vmul.f32 %v389, 2.0
        %v422 = vsub.f32 %v390, %v406
        %v423 = vsub.f32 %v391, %v407
        %v424 = vsub.f32 %v392, %v408
        %v425 = vsub.f32 %v393, %v409
        %v426 = vsub.f32 %v394, %v410
        %v427 = vsub.f32 %v395, %v411
        %v428 = vsub.f32 %v396, %v412
        %v429 = vsub.f32 %v397, %v413
        %v430 = vsub.f32 %v398, %v414
        %v431 = vsub.f32 %v399, %v415
        %v432 = vsub.f32 %v400, %v416
        %v433 = vsub.f32 %v401, %v417
        %v434 = vsub.f32 %v402, %v418
        %v435 = vsub.f32 %v403, %v419
        %v436 = vsub.f32 %v404, %v420
        %v437 = vsub.f32 %v405, %v421
        %v438 = vmul.f32 %v422, %v358
        %v439 = vmul.f32 %v423, %v359
        %v440 = vmul.f32 %v424, %v360
        %v441 = vmul.f32 %v425, %v361
        %v442 = vmul.f32 %v426, %v362
        %v443 = vmul.f32 %v427, %v363
        %v444 = vmul.f32 %v428, %v364
        %v445 = vmul.f32 %v429, %v365
        %v446 = vmul.f32 %v430, %v366
        %v447 = vmul.f32 %v431, %v367
        %v448 = vmul.f32 %v432, %v368
        %v449 = vmul.f32 %v433, %v369
        %v450 = vmul.f32 %v434, %v370
        %v451 = vmul.f32 %v435, %v371
        %v452 = vmul.f32 %v436, %v372
        %v453 = vmul.f32 %v437, %v373
        %vm454 = vcmask 130048
        %455 = vst.msk [vmem:[%s317] sm:$0xff] %vm454, %v438
        %456 = vst.msk [vmem:[%s317 + $0x8] sm:$0xff] %vm454, %v439
        %457 = vst.msk [vmem:[%s317 + $0x10] sm:$0xff] %vm454, %v440
        %458 = vst.msk [vmem:[%s317 + $0x18] sm:$0xff] %vm454, %v441
        %459 = vst.msk [vmem:[%s317 + $0x20] sm:$0xff] %vm454, %v442
        %460 = vst.msk [vmem:[%s317 + $0x28] sm:$0xff] %vm454, %v443
        %461 = vst.msk [vmem:[%s317 + $0x30] sm:$0xff] %vm454, %v444
        %462 = vst.msk [vmem:[%s317 + $0x38] sm:$0xff] %vm454, %v445
        %463 = vst.msk [vmem:[%s317 + $0x40] sm:$0xff] %vm454, %v446
        %464 = vst.msk [vmem:[%s317 + $0x48] sm:$0xff] %vm454, %v447
        %465 = vst.msk [vmem:[%s317 + $0x50] sm:$0xff] %vm454, %v448
        %466 = vst.msk [vmem:[%s317 + $0x58] sm:$0xff] %vm454, %v449
        %467 = vst.msk [vmem:[%s317 + $0x60] sm:$0xff] %vm454, %v450
        %468 = vst.msk [vmem:[%s317 + $0x68] sm:$0xff] %vm454, %v451
        %469 = vst.msk [vmem:[%s317 + $0x70] sm:$0xff] %vm454, %v452
        %470 = vst.msk [vmem:[%s317 + $0x78] sm:$0xff] %vm454, %v453
        %v471 = vmul.f32 %v374, %v358
        %v472 = vmul.f32 %v375, %v359
        %v473 = vmul.f32 %v376, %v360
        %v474 = vmul.f32 %v377, %v361
        %v475 = vmul.f32 %v378, %v362
        %v476 = vmul.f32 %v379, %v363
        %v477 = vmul.f32 %v380, %v364
        %v478 = vmul.f32 %v381, %v365
        %v479 = vmul.f32 %v382, %v366
        %v480 = vmul.f32 %v383, %v367
        %v481 = vmul.f32 %v384, %v368
        %v482 = vmul.f32 %v385, %v369
        %v483 = vmul.f32 %v386, %v370
        %v484 = vmul.f32 %v387, %v371
        %v485 = vmul.f32 %v388, %v372
        %v486 = vmul.f32 %v389, %v373
        %487 = vst.msk [vmem:[%s324] sm:$0xff] %vm454, %v471
        %488 = vst.msk [vmem:[%s324 + $0x8] sm:$0xff] %vm454, %v472
        %489 = vst.msk [vmem:[%s324 + $0x10] sm:$0xff] %vm454, %v473
        %490 = vst.msk [vmem:[%s324 + $0x18] sm:$0xff] %vm454, %v474
        %491 = vst.msk [vmem:[%s324 + $0x20] sm:$0xff] %vm454, %v475
        %492 = vst.msk [vmem:[%s324 + $0x28] sm:$0xff] %vm454, %v476
        %493 = vst.msk [vmem:[%s324 + $0x30] sm:$0xff] %vm454, %v477
        %494 = vst.msk [vmem:[%s324 + $0x38] sm:$0xff] %vm454, %v478
        %495 = vst.msk [vmem:[%s324 + $0x40] sm:$0xff] %vm454, %v479
        %496 = vst.msk [vmem:[%s324 + $0x48] sm:$0xff] %vm454, %v480
        %497 = vst.msk [vmem:[%s324 + $0x50] sm:$0xff] %vm454, %v481
        %498 = vst.msk [vmem:[%s324 + $0x58] sm:$0xff] %vm454, %v482
        %499 = vst.msk [vmem:[%s324 + $0x60] sm:$0xff] %vm454, %v483
        %500 = vst.msk [vmem:[%s324 + $0x68] sm:$0xff] %vm454, %v484
        %501 = vst.msk [vmem:[%s324 + $0x70] sm:$0xff] %vm454, %v485
        %502 = vst.msk [vmem:[%s324 + $0x78] sm:$0xff] %vm454, %v486
        %s503 = smul.u32 8, %s22
        %p504 = scmp.lt.s32.totalorder %s503, 15
        %s505 = scalar_select %p504, %s503, 15
        %s506 = smul.addr %s505, 2
        %s507 = smul.addr %s506, 8
        %s508 = scalar_lea.vmem %s3, %s507
        %s509 = smul.u32 8, %s22
        %p510 = scmp.lt.s32.totalorder %s509, 15
        %s511 = scalar_select %p510, %s509, 15
        %s512 = smul.addr %s511, 2
        %s513 = smul.addr %s512, 8
        %s514 = scalar_lea.vmem %s4, %s513
        // Predicated region
        $region45: #{_build_padded_moduli.1} parent=31 // pred_check
          %p515 = pneg %p118
        $region46: #{_build_padded_moduli.1} parent=31 // pred_check_branch
          %517 = sbr.rel (%p515) target = $region48
        $region47: #{_build_padded_moduli.1} parent=31 // pred_region
          %s518 = smul.u32 8, %s22
        $region48: #{_build_padded_moduli.1} parent=31 // pred_fallthru
          _
        // Predicated region
        $region49: #{_build_padded_moduli.1} parent=31 // pred_check
          %p519 = pneg %p144
        $region50: #{_build_padded_moduli.1} parent=31 // pred_check_branch
          %521 = sbr.rel (%p519) target = $region52
        $region51: #{_build_padded_moduli.1} parent=31 // pred_region
          %s522 = smul.u32 8, %s22
        $region52: #{_build_padded_moduli.1} parent=31 // pred_fallthru
          _
      $region32: #{_build_padded_moduli.1} parent=5 // pred_fallthru
        _
      %p523 = scmp.le.s32.totalorder 2, %s17
      // Predicated region
      $region53: #{_build_padded_moduli.1} parent=5 // pred_check
        %p524 = pneg %p523
      $region54: #{_build_padded_moduli.1} parent=5 // pred_check_branch
        %526 = sbr.rel (%p524) target = $region56
      $region55: #{_build_padded_moduli.1} parent=5 // pred_region
        %s527 = ssub.s32 %s17, 2
        // Predicated region
        $region57: #{_build_padded_moduli.1} parent=55 // pred_check
          %p528 = pneg %p124
        $region58: #{_build_padded_moduli.1} parent=55 // pred_check_branch
          %530 = sbr.rel (%p528) target = $region60
        $region59: #{_build_padded_moduli.1} parent=55 // pred_region
          %s531 = smul.u32 8, %s23
          %p532 = scmp.lt.s32.totalorder %s531, 15
          %s533 = scalar_select %p532, %s531, 15
          %s534 = smul.addr %s533, 2
          %s535 = smul.addr %s534, 8
          %s536 = scalar_lea.vmem %s3, %s535
        $region60: #{_build_padded_moduli.1} parent=55 // pred_fallthru
          _
        // Predicated region
        $region61: #{_build_padded_moduli.1} parent=55 // pred_check
          %p537 = pneg %p150
        $region62: #{_build_padded_moduli.1} parent=55 // pred_check_branch
          %539 = sbr.rel (%p537) target = $region64
        $region63: #{_build_padded_moduli.1} parent=55 // pred_region
          %s540 = smul.u32 8, %s23
          %p541 = scmp.lt.s32.totalorder %s540, 15
          %s542 = scalar_select %p541, %s540, 15
          %s543 = smul.addr %s542, 2
          %s544 = smul.addr %s543, 8
          %s545 = scalar_lea.vmem %s4, %s544
        $region64: #{_build_padded_moduli.1} parent=55 // pred_fallthru
          _
      $region56: #{_build_padded_moduli.1} parent=5 // pred_fallthru
        _
    $region6: #{_build_padded_moduli.1} parent=1 // loop_footer
      %s21 = sadd.s32 1, %s17
    $region7: #{_build_padded_moduli.1} parent=1 // loop_footer_branch
      %16 = sbr.rel target = $region3
    $region8: #{_build_padded_moduli.1} parent=1 // loop_exit
      _
    %546 = vsyncpa [#allocation3], 1
    %s547 = scalar_lea.sflag [#allocation3], 1
    %548 = vsyncpa %s547, 1
    %549 = vsyncpa [#allocation5], 1
    %s550 = scalar_lea.sflag [#allocation5], 1
    %551 = vsyncpa %s550, 1

</llo_original>
